<compile_context>
chip_gen: v6e
topology: v6e:2x2x1
jax: 0.10.0
libtpu: 0.0.40
codegen_flags: <defaults>
</compile_context>

<pallas_src>
import jax
import jax.numpy as jnp
from jax.experimental import pallas as pl
from jax.experimental.pallas import tpu as pltpu


def _maxpool_pair_kernel(a_ref, b_ref, o_ref):
    # a_ref: (tm, tn) tile of even depth slices, b_ref: matching odd slices.
    o_ref[...] = jnp.maximum(a_ref[...], b_ref[...])


def _pick_lane_tile(hw, itemsize, budget):
    """Largest lane tile tn that divides hw and lets an 8-row,
    double-buffered step (2 inputs + 1 output) fit the VMEM budget."""
    def fits(tn):
        return 6 * 8 * tn * itemsize <= budget

    if hw % 128 != 0 or fits(hw):
        return hw                       # full-dim block: always legal
    n128 = hw // 128
    best = 128
    for d in range(1, n128 + 1):        # divisors of hw that are multiples of 128
        if n128 % d == 0 and fits(d * 128):
            best = d * 128
    return best


def simple3dcnn_forward(x, *, vmem_budget_bytes=8 * 1024 * 1024):
    """nn.MaxPool3d(kernel_size=(2, 1, 1)) forward.  x: (N, C, D, H, W)."""
    N, C, D, H, W = x.shape
    D_out = D // 2
    HW = H * W
    if D_out == 0 or HW == 0 or N * C == 0:
        return jnp.zeros((N, C, D_out, H, W), dtype=x.dtype)
    if D % 2:                           # PyTorch floor semantics: drop last slice
        x = x[:, :, : 2 * D_out]

    M = N * C * D_out
    # Free, contiguous reshape: row m holds one depth pair along lanes.
    x_flat = x.reshape(M, 2 * HW)

    itemsize = x.dtype.itemsize
    tn = _pick_lane_tile(HW, itemsize, vmem_budget_bytes)
    n_col_blocks = HW // tn

    rows = vmem_budget_bytes // (6 * tn * itemsize)
    if rows >= M:
        tm = M                          # whole row axis in one block (full dim)
    else:
        tm = min(M, max(8, (rows // 8) * 8))   # sublane-aligned tile

    grid = (pl.cdiv(M, tm), n_col_blocks)

    out_flat = pl.pallas_call(
        _maxpool_pair_kernel,
        out_shape=jax.ShapeDtypeStruct((M, HW), x.dtype),
        grid_spec=pltpu.PrefetchScalarGridSpec(
            num_scalar_prefetch=0,
            grid=grid,
            in_specs=[
                # left half of each row: depth slice 2d
                pl.BlockSpec((tm, tn), lambda i, j: (i, j)),
                # right half of each row: depth slice 2d+1
                pl.BlockSpec((tm, tn), lambda i, j: (i, j + n_col_blocks)),
            ],
            out_specs=pl.BlockSpec((tm, tn), lambda i, j: (i, j)),
        ),
        compiler_params=pltpu.CompilerParams(
            dimension_semantics=("parallel", "parallel"),
            vmem_limit_bytes=32 * 1024 * 1024,
        ),
    )(x_flat, x_flat)                   # same buffer, two windows — no extra copy

    return out_flat.reshape(N, C, D_out, H, W)


if __name__ == "__main__":
    key = jax.random.PRNGKey(0)
    # Small NCDHW input consistent with a 3D pooling module.
    N, C, D, H, W = 2, 4, 8, 16, 16
    x = jax.random.normal(key, (N, C, D, H, W), dtype=jnp.float32)

    out = jax.block_until_ready(simple3dcnn_forward(x))

    # Reference check (pure JAX) — same semantics as nn.MaxPool3d((2, 1, 1)).
    ref = jnp.max(x.reshape(N, C, D // 2, 2, H, W), axis=3)
    assert out.shape == (N, C, D // 2, H, W)
    assert jnp.allclose(out, ref), "mismatch vs. reference maxpool"

    print("KERNEL_OK")
</pallas_src>

<mosaic_0001>
module attributes {stable_mosaic.version = 11 : i64} {
  func.func @_maxpool_pair_kernel(%arg0: i32, %arg1: i32, %arg2: memref<32x256xf32, #tpu.memory_space<vmem>>, %arg3: memref<32x256xf32, #tpu.memory_space<vmem>>, %arg4: memref<32x256xf32, #tpu.memory_space<vmem>>) attributes {dimension_semantics = [#tpu.dimension_semantics<parallel>, #tpu.dimension_semantics<parallel>], iteration_bounds = array<i64: 1, 1>, scalar_prefetch = 0 : i64, scratch_operands = 0 : i64, tpu.core_type = #tpu.core_type<tc>, window_params = [{transform_indices = @transform_0, window_bounds = array<i64: 32, 256>}, {transform_indices = @transform_1, window_bounds = array<i64: 32, 256>}, {transform_indices = @transform_2, window_bounds = array<i64: 32, 256>}]} {
    %c0 = arith.constant 0 : index
    %c0_0 = arith.constant 0 : index
    %0 = vector.load %arg2[%c0, %c0_0] : memref<32x256xf32, #tpu.memory_space<vmem>>, vector<32x256xf32>
    %c0_1 = arith.constant 0 : index
    %c0_2 = arith.constant 0 : index
    %1 = vector.load %arg3[%c0_1, %c0_2] : memref<32x256xf32, #tpu.memory_space<vmem>>, vector<32x256xf32>
    %2 = arith.maximumf %0, %1 : vector<32x256xf32>
    %c0_3 = arith.constant 0 : index
    %c0_4 = arith.constant 0 : index
    %3 = vector.load %arg4[%c0_3, %c0_4] : memref<32x256xf32, #tpu.memory_space<vmem>>, vector<32x256xf32>
    tpu.vector_store %arg4[%c0_3, %c0_4], %2 {strides = array<i32>} : memref<32x256xf32, #tpu.memory_space<vmem>>, vector<32x256xf32>,
    return
  }
  func.func @transform_0(%arg0: i32, %arg1: i32) -> (i32, i32) {
    %c0_i32 = arith.constant 0 : i32
    return %arg0, %arg1 : i32, i32
  }
  func.func @transform_1(%arg0: i32, %arg1: i32) -> (i32, i32) {
    %c1_i32 = arith.constant 1 : i32
    %0 = arith.addi %arg1, %c1_i32 : i32
    %c0_i32 = arith.constant 0 : i32
    return %arg0, %0 : i32, i32
  }
  func.func @transform_2(%arg0: i32, %arg1: i32) -> (i32, i32) {
    %c0_i32 = arith.constant 0 : i32
    return %arg0, %arg1 : i32, i32
  }
}

</mosaic_0001>

<llo_original>
// kernel: tpu_custom_call.1
$region0: #{tpu_custom_call.1}
  #allocation0 [shape = 'u32[]', space=smem, size = 0x4, offset = 0x4, fixed_abs, tag = 'smem constant byte address 0x4 - core index']
  #allocation1 [shape = 'u32[144,128]{1,0:T(1,128)}', space=vmem, size = 0x12000, scoped, tag = 'internal scratch']
  %s0 = inlined_call_operand.hbm [shape: f32[32,512], index: 0, kind: input, shape index: {}]
  %s1 = inlined_call_operand.hbm [shape: f32[32,512], index: 1, kind: input, shape index: {}]
  %s2 = inlined_call_operand.hbm [shape: f32[32,256], index: 2, kind: output, shape index: {}]
  %s3 = sld [smem:[#allocation0]]
  $region26: #{tpu_custom_call.1} parent=0
    _
  %s5 = ssub.s32 1, %s3
  %s6 = scalar_select 0, %s5, %s3
  $region1: #{tpu_custom_call.1} parent=0
    #allocation2 [shape = 'u8[32768]{0}', space=vmem, size = 0x8000, scoped, tag = 'input window, operand 0, single buffered']
    #allocation3 [shape = 's32[1]{0}', space=sflag, size = 0x4, scoped, tag = 'scoped memory for tpu_custom_call.1']
    #allocation4 [shape = 's32[1]{0}', space=sflag, size = 0x4, scoped, tag = 'scoped memory for tpu_custom_call.1']
    #allocation5 [shape = 'u8[32768]{0}', space=vmem, size = 0x8000, scoped, tag = 'input window, operand 1, single buffered']
    #allocation6 [shape = 's32[1]{0}', space=sflag, size = 0x4, scoped, tag = 'scoped memory for tpu_custom_call.1']
    #allocation7 [shape = 'u8[32768]{0}', space=vmem, size = 0x8000, scoped, tag = 'output window, operand 0, single buffered']
    %7 = vsyncpa [#allocation3], 0
    %8 = vsyncpa [#allocation6], 0
    %9 = vsyncpa [#allocation4], 0
    // Predicated region
    $region2: #{tpu_custom_call.1} parent=1 // pred_check
      _
    $region3: #{tpu_custom_call.1} parent=1 // pred_check_branch
      %11 = sbr.rel (0) target = $region5
    $region4: #{tpu_custom_call.1} parent=1 // pred_region
      %s13 = ssub.s32 1024, 1024
      %14 = vsyncadd [#allocation3], %s13
      %s15 = sshll.u32 [#allocation2], 4
      %s16 = int_to_ptr.vmem [resolvable:$true] %s15
      %21 = dma.hbm_to_vmem [thread:$0]  %s0, 1024, %s16, [#allocation3], 512, 256, 16
    $region5: #{tpu_custom_call.1} parent=1 // pred_fallthru
      _
    // Predicated region
    $region6: #{tpu_custom_call.1} parent=1 // pred_check
      _
    $region7: #{tpu_custom_call.1} parent=1 // pred_check_branch
      %23 = sbr.rel (0) target = $region9
    $region8: #{tpu_custom_call.1} parent=1 // pred_region
      %s24 = sadd.s32 0, 1
      %s25 = smul.u32 2, %s24
      %s27 = ssub.s32 1024, 1024
      %28 = vsyncadd [#allocation6], %s27
      %s29 = smul.addr %s25, 128
      %s30 = scalar_lea.hbm %s1, %s29
      %s31 = sshll.u32 [#allocation5], 4
      %s32 = int_to_ptr.vmem [resolvable:$true] %s31
      %37 = dma.hbm_to_vmem [thread:$0]  %s30, 1024, %s32, [#allocation6], 512, 256, 16
    $region9: #{tpu_custom_call.1} parent=1 // pred_fallthru
      _
    // Predicated region
    $region10: #{tpu_custom_call.1} parent=1 // pred_check
      _
    $region11: #{tpu_custom_call.1} parent=1 // pred_check_branch
      %39 = sbr.rel (0) target = $region13
    $region12: #{tpu_custom_call.1} parent=1 // pred_region
      %40 = dma.done [#allocation3], 1024
    $region13: #{tpu_custom_call.1} parent=1 // pred_fallthru
      _
    // Predicated region
    $region14: #{tpu_custom_call.1} parent=1 // pred_check
      _
    $region15: #{tpu_custom_call.1} parent=1 // pred_check_branch
      %42 = sbr.rel (0) target = $region17
    $region16: #{tpu_custom_call.1} parent=1 // pred_region
      %43 = dma.done [#allocation6], 1024
    $region17: #{tpu_custom_call.1} parent=1 // pred_fallthru
      _
    %s44 = sadd.s32 0, 1
    %s45 = smul.u32 2, %s44
    %v46 = vld [vmem:[#allocation2] sm:$0xff]
    %v47 = vld [vmem:[#allocation2 + $0x8] sm:$0xff]
    %v48 = vld [vmem:[#allocation2 + $0x10] sm:$0xff]
    %v49 = vld [vmem:[#allocation2 + $0x18] sm:$0xff]
    %v50 = vld [vmem:[#allocation2 + $0x20] sm:$0xff]
    %v51 = vld [vmem:[#allocation2 + $0x28] sm:$0xff]
    %v52 = vld [vmem:[#allocation2 + $0x30] sm:$0xff]
    %v53 = vld [vmem:[#allocation2 + $0x38] sm:$0xff]
    %v54 = vld [vmem:[#allocation5] sm:$0xff]
    %v55 = vld [vmem:[#allocation5 + $0x8] sm:$0xff]
    %v56 = vld [vmem:[#allocation5 + $0x10] sm:$0xff]
    %v57 = vld [vmem:[#allocation5 + $0x18] sm:$0xff]
    %v58 = vld [vmem:[#allocation5 + $0x20] sm:$0xff]
    %v59 = vld [vmem:[#allocation5 + $0x28] sm:$0xff]
    %v60 = vld [vmem:[#allocation5 + $0x30] sm:$0xff]
    %v61 = vld [vmem:[#allocation5 + $0x38] sm:$0xff]
    %v62 = vmax.f32 %v46, %v54
    %v63 = vmax.f32 %v47, %v55
    %v64 = vmax.f32 %v48, %v56
    %v65 = vmax.f32 %v49, %v57
    %v66 = vmax.f32 %v50, %v58
    %v67 = vmax.f32 %v51, %v59
    %v68 = vmax.f32 %v52, %v60
    %v69 = vmax.f32 %v53, %v61
    %70 = vst [vmem:[#allocation7] sm:$0xff] %v62
    %71 = vst [vmem:[#allocation7 + $0x8] sm:$0xff] %v63
    %72 = vst [vmem:[#allocation7 + $0x10] sm:$0xff] %v64
    %73 = vst [vmem:[#allocation7 + $0x18] sm:$0xff] %v65
    %74 = vst [vmem:[#allocation7 + $0x20] sm:$0xff] %v66
    %75 = vst [vmem:[#allocation7 + $0x28] sm:$0xff] %v67
    %76 = vst [vmem:[#allocation7 + $0x30] sm:$0xff] %v68
    %77 = vst [vmem:[#allocation7 + $0x38] sm:$0xff] %v69
    // Predicated region
    $region18: #{tpu_custom_call.1} parent=1 // pred_check
      _
    $region19: #{tpu_custom_call.1} parent=1 // pred_check_branch
      %79 = sbr.rel (0) target = $region21
    $region20: #{tpu_custom_call.1} parent=1 // pred_region
      %s81 = ssub.s32 1024, 1024
      %82 = vsyncadd [#allocation4], %s81
      %s83 = sshll.u32 [#allocation7], 4
      %s84 = int_to_ptr.vmem [resolvable:$true] %s83
      %89 = dma.vmem_to_hbm [thread:$0]  %s84, 1024, %s2, [#allocation4], 256, 256, 16
    $region21: #{tpu_custom_call.1} parent=1 // pred_fallthru
      _
    // Predicated region
    $region22: #{tpu_custom_call.1} parent=1 // pred_check
      _
    $region23: #{tpu_custom_call.1} parent=1 // pred_check_branch
      %91 = sbr.rel (0) target = $region25
    $region24: #{tpu_custom_call.1} parent=1 // pred_region
      %92 = dma.done [#allocation4], 1024
    $region25: #{tpu_custom_call.1} parent=1 // pred_fallthru
      _
    %93 = vsyncpa [#allocation3], 1
    %94 = vsyncpa [#allocation6], 1
    %95 = vsyncpa [#allocation4], 1

</llo_original>
